<compile_context>
chip_gen: v7x
topology: tpu7x:2x2x1
jax: 0.10.0
libtpu: 0.0.40
codegen_flags: <defaults>
</compile_context>

<pallas_src>
import jax
import jax.numpy as jnp
import numpy as np
from jax import lax
from jax.experimental import pallas as pl
from jax.experimental.pallas import tpu as pltpu


def _silu(y):
    # y * sigmoid(y); exp and the approximate reciprocal both run on the EUP slot.
    return y * pl.reciprocal(1.0 + jnp.exp(-y), approx=True)


def _fold_bn(w_oihw, bn, eps):
    """Fold an inference BatchNorm into its preceding (bias-free) conv.

    w_oihw: (O, I, kh, kw); bn: dict(gamma, beta, mean, var) each (O,).
    Returns (scaled weight, per-channel bias), both f32.
    """
    gamma = bn["gamma"].astype(jnp.float32)
    beta = bn["beta"].astype(jnp.float32)
    mean = bn["mean"].astype(jnp.float32)
    var = bn["var"].astype(jnp.float32)
    inv_std = 1.0 / jnp.sqrt(var + eps)
    scale = gamma * inv_std
    w = w_oihw.astype(jnp.float32) * scale[:, None, None, None]
    bias = beta - mean * scale
    return w, bias


_ROLL_MATCHES_JNP = None


def _roll_matches_jnp_convention():
    """Probe pltpu.roll's rotation direction once (element i -> i+shift, like jnp.roll?)."""
    global _ROLL_MATCHES_JNP
    if _ROLL_MATCHES_JNP is None:
        def probe(x_ref, o_ref):
            o_ref[...] = pltpu.roll(x_ref[...], 1, axis=0)

        x = jnp.arange(8 * 128, dtype=jnp.float32).reshape(8, 128)
        y = pl.pallas_call(
            probe, out_shape=jax.ShapeDtypeStruct((8, 128), jnp.float32))(x)
        # jnp.roll convention: old row 0 lands in row 1.
        _ROLL_MATCHES_JNP = bool(y[1, 0] == x[0, 0])
    return _ROLL_MATCHES_JNP


def _make_kernel(n_x, H, W, cmid, cout_p, shift_xm1, shift_xp1):
    """Build the fused kernel for `n_x` stage-1 input blocks (all shapes/shifts static)."""

    def kernel(*refs):
        x_refs = refs[:n_x]                                   # each (1, H, W, Ci) bf16
        w1_refs = refs[n_x:2 * n_x]                           # each (Ci, cmid)    bf16
        b1_ref, w2_ref, b2_ref, w3_ref, b3_ref, o_ref, hpad_ref = refs[2 * n_x:]

        # ---- stage 1: (fused) channel concat + 1x1 conv + BN + SiLU -----------------
        acc1 = None
        for xr, wr in zip(x_refs, w1_refs):
            xi = xr[0]                                        # (H, W, Ci) bf16
            part = jnp.dot(xi.reshape(H * W, xi.shape[-1]), wr[...],
                           preferred_element_type=jnp.float32)
            acc1 = part if acc1 is None else acc1 + part
        h1 = _silu(acc1 + b1_ref[...]).reshape(H, W, cmid)    # f32

        # ---- build the stage-2 operand in the H-padded scratch ----------------------
        # hpad layout: (H+2, W, 3*cmid) bf16; channel blocks = [col x-1 | col x | col x+1].
        # The +/-1 column shifts run on the XLU (pltpu.roll) with an iota mask supplying
        # the zero padding at the W edges (no sublane-unaligned slices / relayout copies).
        col = lax.broadcasted_iota(jnp.int32, (H, W, cmid), 1)
        h_xm1 = jnp.where(col == 0, 0.0, pltpu.roll(h1, shift_xm1, axis=1))
        h_xp1 = jnp.where(col == W - 1, 0.0, pltpu.roll(h1, shift_xp1, axis=1))

        zrow = jnp.zeros((1, W, 3 * cmid), hpad_ref.dtype)
        hpad_ref[0:1] = zrow                                  # top halo row    (y = -1)
        hpad_ref[H + 1:H + 2] = zrow                          # bottom halo row (y = H)
        hpad_ref[1:H + 1, :, 0:cmid] = h_xm1.astype(hpad_ref.dtype)
        hpad_ref[1:H + 1, :, cmid:2 * cmid] = h1.astype(hpad_ref.dtype)
        hpad_ref[1:H + 1, :, 2 * cmid:3 * cmid] = h_xp1.astype(hpad_ref.dtype)

        # ---- stage 2: 3x3 conv (pad=1) as 3 MXU matmuls with K = 3*cmid --------------
        acc2 = None
        for kh in range(3):
            tap = hpad_ref[kh:kh + H].reshape(H * W, 3 * cmid)            # bf16
            wk = w2_ref[kh * 3 * cmid:(kh + 1) * 3 * cmid, :]             # (3*cmid, cmid)
            part = jnp.dot(tap, wk, preferred_element_type=jnp.float32)
            acc2 = part if acc2 is None else acc2 + part
        h2 = _silu(acc2 + b2_ref[...])                                    # (H*W, cmid) f32

        # ---- stage 3: final 1x1 conv + BN + SiLU (cout padded to a lane multiple) ----
        y3 = jnp.dot(h2.astype(w3_ref.dtype), w3_ref[...],
                     preferred_element_type=jnp.float32) + b3_ref[...]
        o_ref[0] = _silu(y3).reshape(H, W, cout_p).astype(o_ref.dtype)

    return kernel


def _vmem_limit_bytes(H, W, cin_total, cmid, cout_p, out_itemsize):
    bf, f32 = 2, 4
    inputs = 2 * H * W * cin_total * bf                        # double-buffered x blocks
    output = 2 * H * W * cout_p * out_itemsize                 # double-buffered out block
    weights = 2 * ((cin_total + 9 * cmid) * cmid + cmid * cout_p) * bf
    biases = 2 * (2 * cmid + cout_p) * f32
    scratch = (H + 2) * W * 3 * cmid * bf
    live = H * W * (4 * cmid + cout_p) * f32                   # h1 / taps / acc / y3 (rough)
    total = inputs + output + weights + biases + scratch + live
    return int(min(max(2 * total + (8 << 20), 24 << 20), 64 << 20))


def conv_edge_fusion_nhwc(xs_nhwc, params, eps=1e-3):
    """Core entry point: NHWC end-to-end (no layout transposes inside the kernel).

    xs_nhwc: list of (N, H, W, Ci) arrays; params: dict with
      w1 (cmid, sum(Ci), 1, 1), bn1; w2 (cmid, cmid, 3, 3), bn2; w3 (cout, cmid, 1, 1), bn3.
    `eps` follows the Ultralytics Conv BatchNorm default (1e-3); pass eps=1e-5 if the weights
    come from a vanilla nn.BatchNorm2d.  Returns (N, H, W, cout).
    """
    n_in = len(xs_nhwc)
    N, H, W, _ = xs_nhwc[0].shape
    assert all(x.shape[:3] == (N, H, W) for x in xs_nhwc), \
        "all fused inputs must share batch and spatial dims"
    cins = [int(x.shape[-1]) for x in xs_nhwc]
    cin_total = sum(cins)
    cmid = int(params["w1"].shape[0])
    cout = int(params["w3"].shape[0])
    cout_p = max(128, ((cout + 127) // 128) * 128)             # lane-dense output store
    out_dtype = xs_nhwc[0].dtype

    # Fold every BatchNorm into its conv; only the per-channel bias add stays in-kernel.
    w1, b1 = _fold_bn(params["w1"], params["bn1"], eps)        # (cmid, cin_total, 1, 1)
    w2, b2 = _fold_bn(params["w2"], params["bn2"], eps)        # (cmid, cmid, 3, 3)
    w3, b3 = _fold_bn(params["w3"], params["bn3"], eps)        # (cout, cmid, 1, 1)

    # Matmul operands in bf16 (MXU-native); accumulation / bias / SiLU stay f32 in-kernel.
    w1_t = jnp.transpose(w1.reshape(cmid, cin_total)).astype(jnp.bfloat16)   # (cin_total, cmid)
    # rows of w2_t: (kh, kw, cin) flattened -> row = (kh*3 + kw)*cmid + cin
    w2_t = jnp.transpose(w2, (2, 3, 1, 0)).reshape(9 * cmid, cmid).astype(jnp.bfloat16)
    w3_t = jnp.transpose(w3.reshape(cout, cmid)).astype(jnp.bfloat16)        # (cmid, cout)
    if cout_p != cout:
        w3_t = jnp.pad(w3_t, ((0, 0), (0, cout_p - cout)))
        b3 = jnp.pad(b3, (0, cout_p - cout))
    b1 = b1.reshape(1, cmid)
    b2 = b2.reshape(1, cmid)
    b3 = b3.reshape(1, cout_p)

    # Split stage 1 per input only when every Ci is lane-dense (>=128); otherwise concatenate
    # once in the wrapper so stage 1 is a single matmul with a lane-dense input DMA.
    if n_in > 1 and all(c >= 128 for c in cins):
        xs_mm = [x.astype(jnp.bfloat16) for x in xs_nhwc]
        offs = np.cumsum([0] + cins)
        w1_parts = [w1_t[int(offs[i]):int(offs[i + 1])] for i in range(n_in)]
    else:
        xs_mm = [jnp.concatenate([x.astype(jnp.bfloat16) for x in xs_nhwc], axis=-1)]
        w1_parts = [w1_t]
    cins_mm = [int(x.shape[-1]) for x in xs_mm]
    n_x = len(xs_mm)

    # pltpu.roll direction for the +/-1 column taps (probed once, convention-proof).
    if _roll_matches_jnp_convention():
        shift_xm1, shift_xp1 = 1, W - 1        # bring h1[:, x-1] / h1[:, x+1] to column x
    else:
        shift_xm1, shift_xp1 = W - 1, 1

    kernel = _make_kernel(n_x, H, W, cmid, cout_p, shift_xm1, shift_xp1)
    vmem_limit = _vmem_limit_bytes(H, W, cin_total, cmid, cout_p,
                                   jnp.dtype(out_dtype).itemsize)

    def run(single_buffer_weights):
        def const_spec(shape):
            ndim = len(shape)

            def idx(n):
                return (0,) * ndim

            if single_buffer_weights:
                # constant operands: index_map never changes -> one buffer is enough
                return pl.BlockSpec(shape, idx, pipeline_mode=pl.Buffered(1))
            return pl.BlockSpec(shape, idx)

        in_specs = (
            [pl.BlockSpec((1, H, W, c), lambda n: (n, 0, 0, 0)) for c in cins_mm]
            + [const_spec((c, cmid)) for c in cins_mm]
            + [const_spec((1, cmid)),
               const_spec((9 * cmid, cmid)),
               const_spec((1, cmid)),
               const_spec((cmid, cout_p)),
               const_spec((1, cout_p))]
        )
        return pl.pallas_call(
            kernel,
            out_shape=jax.ShapeDtypeStruct((N, H, W, cout_p), out_dtype),
            grid_spec=pltpu.PrefetchScalarGridSpec(
                num_scalar_prefetch=0,
                grid=(N,),
                in_specs=in_specs,
                out_specs=pl.BlockSpec((1, H, W, cout_p), lambda n: (n, 0, 0, 0)),
                scratch_shapes=[pltpu.VMEM((H + 2, W, 3 * cmid), jnp.bfloat16)]),
            compiler_params=pltpu.CompilerParams(
                # every grid step is an independent image -> shard across TensorCores
                dimension_semantics=("parallel",),
                vmem_limit_bytes=vmem_limit),
        )(*xs_mm, *w1_parts, b1, w2_t, b2, w3_t, b3)

    try:
        out = run(True)
    except Exception:
        # pl.Buffered(1) not supported by this jax/libtpu combo -> plain double-buffered specs
        out = run(False)

    if cout_p != cout:
        out = out[..., :cout]
    return out


def conv_edge_fusion(xs_nchw, params, eps=1e-3):
    """PyTorch-convention wrapper: list of NCHW inputs -> NCHW output."""
    xs_nhwc = [jnp.transpose(x, (0, 2, 3, 1)) for x in xs_nchw]
    out = conv_edge_fusion_nhwc(xs_nhwc, params, eps)
    return jnp.transpose(out, (0, 3, 1, 2))


def conv_edge_fusion_ref(xs_nchw, params, eps=1e-3):
    """Pure-JAX reference (NCHW, f32), mirrors the PyTorch module in eval mode."""
    x = jnp.concatenate([a.astype(jnp.float32) for a in xs_nchw], axis=1)

    def conv_bn_silu(x, w, bn, pad):
        y = lax.conv_general_dilated(
            x, w.astype(jnp.float32), window_strides=(1, 1),
            padding=[(pad, pad), (pad, pad)],
            dimension_numbers=("NCHW", "OIHW", "NCHW"),
            precision=lax.Precision.HIGHEST)
        inv_std = 1.0 / jnp.sqrt(bn["var"].astype(jnp.float32) + eps)
        scale = (bn["gamma"] * inv_std)[None, :, None, None]
        bias = (bn["beta"] - bn["mean"] * bn["gamma"] * inv_std)[None, :, None, None]
        y = y * scale + bias
        return y * (1.0 / (1.0 + jnp.exp(-y)))

    y = conv_bn_silu(x, params["w1"], params["bn1"], 0)
    y = conv_bn_silu(y, params["w2"], params["bn2"], 1)
    y = conv_bn_silu(y, params["w3"], params["bn3"], 0)
    return y


if __name__ == "__main__":
    key = jax.random.PRNGKey(0)
    keys = jax.random.split(key, 8)

    N, H, W = 2, 16, 16
    inc = (4, 4)          # two feature maps to fuse
    ouc = 32
    cmid = ouc // 2

    x1 = jax.random.normal(keys[0], (N, inc[0], H, W), dtype=jnp.float32)
    x2 = jax.random.normal(keys[1], (N, inc[1], H, W), dtype=jnp.float32)

    def bn_params(k, c):
        kg, kb, km, kv = jax.random.split(k, 4)
        return dict(
            gamma=jax.random.uniform(kg, (c,), minval=0.5, maxval=1.5, dtype=jnp.float32),
            beta=0.1 * jax.random.normal(kb, (c,), dtype=jnp.float32),
            mean=0.1 * jax.random.normal(km, (c,), dtype=jnp.float32),
            var=jax.random.uniform(kv, (c,), minval=0.5, maxval=1.5, dtype=jnp.float32),
        )

    params = {
        "w1": 0.3 * jax.random.normal(keys[2], (cmid, sum(inc), 1, 1), dtype=jnp.float32),
        "bn1": bn_params(keys[3], cmid),
        "w2": 0.2 * jax.random.normal(keys[4], (cmid, cmid, 3, 3), dtype=jnp.float32),
        "bn2": bn_params(keys[5], cmid),
        "w3": 0.3 * jax.random.normal(keys[6], (ouc, cmid, 1, 1), dtype=jnp.float32),
        "bn3": bn_params(keys[7], ouc),
    }

    out = conv_edge_fusion([x1, x2], params)
    out = jax.block_until_ready(out)

    ref = conv_edge_fusion_ref([x1, x2], params)
    # bf16 matmuls + approximate-reciprocal sigmoid -> looser tolerance than the f32 version.
    np.testing.assert_allclose(np.asarray(out), np.asarray(ref), rtol=4e-2, atol=4e-2)

    print("KERNEL_OK")
</pallas_src>

<mosaic_0001>
module attributes {stable_mosaic.version = 11 : i64} {
  func.func @probe(%arg0: memref<8x128xf32, #tpu.memory_space<vmem>>, %arg1: memref<8x128xf32, #tpu.memory_space<vmem>>) attributes {dimension_semantics = [], scalar_prefetch = 0 : i64, scratch_operands = 0 : i64, tpu.core_type = #tpu.core_type<tc>} {
    %c0 = arith.constant 0 : index
    %c0_0 = arith.constant 0 : index
    %0 = vector.load %arg0[%c0, %c0_0] : memref<8x128xf32, #tpu.memory_space<vmem>>, vector<8x128xf32>
    %c1_i32 = arith.constant 1 : i32
    %1 = tpu.dynamic_rotate %0 by %c1_i32 dim 0 : vector<8x128xf32>, i32 -> vector<8x128xf32>
    %c0_1 = arith.constant 0 : index
    %c0_2 = arith.constant 0 : index
    %2 = vector.load %arg1[%c0_1, %c0_2] : memref<8x128xf32, #tpu.memory_space<vmem>>, vector<8x128xf32>
    tpu.vector_store %arg1[%c0_1, %c0_2], %1 {strides = array<i32>} : memref<8x128xf32, #tpu.memory_space<vmem>>, vector<8x128xf32>,
    return
  }
}

</mosaic_0001>

<llo_original>
// kernel: tpu_custom_call.1
$region0: #{tpu_custom_call.1}
  #allocation0 [shape = 'u32[]', space=smem, size = 0x4, offset = 0x4, fixed_abs, tag = 'smem constant byte address 0x4 - core index']
  #allocation1 [shape = 'u32[144,128]{1,0:T(1,128)}', space=vmem, size = 0x12000, scoped, tag = 'internal scratch']
  %s0 = inlined_call_operand.hbm [shape: f32[8,128], index: 0, kind: input, shape index: {}]
  %s1 = inlined_call_operand.hbm [shape: f32[8,128], index: 1, kind: output, shape index: {}]
  %s2 = sld [smem:[#allocation0]]
  $region18: #{tpu_custom_call.1} parent=0
    _
  %s4 = ssub.s32 1, %s2
  %s5 = scalar_select 0, %s4, %s2
  $region1: #{tpu_custom_call.1} parent=0
    #allocation2 [shape = 'u8[4096]{0}', space=vmem, size = 0x1000, scoped, tag = 'input window, operand 0, single buffered']
    #allocation3 [shape = 's32[1]{0}', space=sflag, size = 0x4, scoped, tag = 'scoped memory for tpu_custom_call.1']
    #allocation4 [shape = 's32[1]{0}', space=sflag, size = 0x4, scoped, tag = 'scoped memory for tpu_custom_call.1']
    #allocation5 [shape = 'u8[4096]{0}', space=vmem, size = 0x1000, scoped, tag = 'output window, operand 0, single buffered']
    %6 = vsyncpa [#allocation3], 0
    %7 = vsyncpa [#allocation4], 0
    // Predicated region
    $region2: #{tpu_custom_call.1} parent=1 // pred_check
      _
    $region3: #{tpu_custom_call.1} parent=1 // pred_check_branch
      %9 = sbr.rel (0) target = $region5
    $region4: #{tpu_custom_call.1} parent=1 // pred_region
      %s11 = ssub.s32 128, 128
      %12 = vsyncadd [#allocation3], %s11
      %s14 = sshll.u32 [#allocation2], 4
      %s15 = int_to_ptr.vmem [resolvable:$true] %s14
      %17 = dma.hbm_to_vmem [thread:$0]  %s0, 128, %s15, [#allocation3]
    $region5: #{tpu_custom_call.1} parent=1 // pred_fallthru
      _
    // Predicated region
    $region6: #{tpu_custom_call.1} parent=1 // pred_check
      _
    $region7: #{tpu_custom_call.1} parent=1 // pred_check_branch
      %19 = sbr.rel (0) target = $region9
    $region8: #{tpu_custom_call.1} parent=1 // pred_region
      %20 = dma.done [#allocation3], 128
    $region9: #{tpu_custom_call.1} parent=1 // pred_fallthru
      _
    %v21 = vld [vmem:[#allocation2] sm:$0xff]
    %v22 = vrot.slane %v21, 7
    %23 = vst [vmem:[#allocation5] sm:$0xff] %v22
    // Predicated region
    $region10: #{tpu_custom_call.1} parent=1 // pred_check
      _
    $region11: #{tpu_custom_call.1} parent=1 // pred_check_branch
      %25 = sbr.rel (0) target = $region13
    $region12: #{tpu_custom_call.1} parent=1 // pred_region
      %s27 = ssub.s32 128, 128
      %28 = vsyncadd [#allocation4], %s27
      %s30 = sshll.u32 [#allocation5], 4
      %s31 = int_to_ptr.vmem [resolvable:$true] %s30
      %33 = dma.vmem_to_hbm [thread:$0]  %s31, 128, %s1, [#allocation4]
    $region13: #{tpu_custom_call.1} parent=1 // pred_fallthru
      _
    // Predicated region
    $region14: #{tpu_custom_call.1} parent=1 // pred_check
      _
    $region15: #{tpu_custom_call.1} parent=1 // pred_check_branch
      %35 = sbr.rel (0) target = $region17
    $region16: #{tpu_custom_call.1} parent=1 // pred_region
      %36 = dma.done [#allocation4], 128
    $region17: #{tpu_custom_call.1} parent=1 // pred_fallthru
      _
    %37 = vsyncpa [#allocation3], 1
    %38 = vsyncpa [#allocation4], 1

</llo_original>
